<compile_context>
chip_gen: v5e
topology: v5e:2x2
jax: 0.10.0
libtpu: 0.0.40
codegen_flags: <defaults>
</compile_context>

<pallas_src>
import functools

import jax
import jax.numpy as jnp
from jax import lax
from jax.experimental import pallas as pl
from jax.experimental.pallas import tpu as pltpu


def _resblock_kernel(x_ref, m_ref, w1_ref, t1_ref, w2_ref, t2_ref,
                     out_ref, patches_ref, *, W, compute_dtype):
    """Fused ResidualBlock forward for one block of B images.

    x_ref:       (B, Cp, HW)  inputs, channels zero-padded to Cp
    m_ref:       (9, B*HW)    per-tap {0,1} halo masks (f32)
    w1_ref:      (Cp, 9*Cp)   conv1 im2col weights with bn1 scale folded in
    t1_ref:      (Cp, 1)      conv1 folded bias + bn1 shift
    w2_ref:      (C,  9*Cp)   conv2 im2col weights with bn2 scale folded in
    t2_ref:      (C,  1)      conv2 folded bias + bn2 shift
    out_ref:     (B, C, HW)
    patches_ref: (9*Cp, B*HW) im2col scratch, compute_dtype
    """
    B, Cp, HW = x_ref.shape
    C = out_ref.shape[1]
    T = B * HW

    # All B images of this grid step, concatenated on the lane (pixel) axis.
    if B == 1:
        x_cat = x_ref[0].astype(jnp.float32)                 # (Cp, T)
    else:
        x_cat = jnp.concatenate([x_ref[b] for b in range(B)],
                                axis=-1).astype(jnp.float32)  # aligned concat

    def build_patches(v):
        # v: (Cp, T) f32.  patches[tap*Cp + c, p] = v[c, p + off_tap] when that
        # neighbour lies inside the same image, else 0, with
        # off_tap = (dh-1)*W + (dw-1) in flattened-pixel space.
        # roll (XLU) + precomputed masks -> full-width vreg-aligned stores and
        # no scratch zero-fill (every element is rewritten here).
        for dh in range(3):
            for dw in range(3):
                tap = dh * 3 + dw
                off = (dh - 1) * W + (dw - 1)
                tap_v = v if off == 0 else pltpu.roll(v, (-off) % T, axis=1)
                if tap != 4:                    # centre-tap mask is all ones
                    tap_v = tap_v * m_ref[tap:tap + 1, :]
                patches_ref[tap * Cp:(tap + 1) * Cp, :] = (
                    tap_v.astype(compute_dtype))

    def conv3x3(v, w_ref, t_ref):
        build_patches(v)                                     # (9*Cp, T)
        acc = jnp.dot(w_ref[...], patches_ref[...],          # one MXU matmul
                      preferred_element_type=jnp.float32)
        return acc + t_ref[...]                              # folded bias/BN

    y = jnp.maximum(conv3x3(x_cat, w1_ref, t1_ref), 0.0)     # conv1+bn1+ReLU
    # TODO(synk): nn.Dropout is identity in eval mode; train-mode dropout and
    # batch-statistics BatchNorm are intentionally not reproduced.
    z = conv3x3(y, w2_ref, t2_ref)                           # conv2+bn2
    res = z + x_cat[:C, :]                                   # residual add
    for b in range(B):
        out_ref[b] = res[:, b * HW:(b + 1) * HW].astype(out_ref.dtype)


def _fold_conv_bn(w_oihw, b, gamma, beta, mean, var, eps, cin_pad, cout_pad,
                  compute_dtype):
    """Fold Conv2d bias + eval-mode BatchNorm into padded im2col weights.

    Returns:
      w: (cout_pad, 9*cin_pad) compute_dtype, column order
         (dh*3 + dw)*cin_pad + ci, zero in all padded rows/columns.
      t: (cout_pad, 1) float32 folded per-channel shift, zero-padded.
    """
    cout, cin = w_oihw.shape[0], w_oihw.shape[1]
    scale = gamma / jnp.sqrt(var + eps)                      # (cout,)
    w = jnp.transpose(w_oihw, (0, 2, 3, 1)).reshape(cout, 9, cin)
    w = w * scale[:, None, None]
    w = jnp.pad(w, ((0, cout_pad - cout), (0, 0), (0, cin_pad - cin)))
    w = w.reshape(cout_pad, 9 * cin_pad).astype(compute_dtype)
    t = b * scale + (beta - mean * scale)                    # (cout,)
    t = jnp.pad(t, (0, cout_pad - cout)).reshape(cout_pad, 1)
    return w, t.astype(jnp.float32)


def _pick_batch_tile(N, HW, Cp, cd_bytes, *, lane_target=4096,
                     patch_budget=8 << 20, min_steps=4):
    """Images per grid step: keep >= min(N, min_steps) grid steps for pipeline
    depth / megacore sharding, then widen the matmul lane dim (B*HW) up to
    lane_target while the (9*Cp, B*HW) im2col scratch stays under budget."""
    if HW % 128:                      # only widen with lane-aligned images
        return 1
    steps_needed = min(N, min_steps)
    best = 1
    for b in range(2, N + 1):
        if N % b:
            continue
        if N // b < steps_needed:
            break
        if b * HW > lane_target:
            break
        if 9 * Cp * b * HW * cd_bytes > patch_budget:
            break
        best = b
    return best


def _vmem_limit_bytes(B, C, Cp, HW, x_bytes, cd_bytes):
    """Scoped-VMEM limit derived from the actual per-step buffers."""
    T = B * HW
    est = 2 * B * Cp * HW * x_bytes                     # x blocks (2 bufs)
    est += 2 * B * C * HW * x_bytes                     # out blocks (2 bufs)
    est += 2 * 16 * T * 4                               # tap masks (9->16 rows)
    est += 2 * (Cp + C) * (9 * Cp * cd_bytes + 128 * 4)  # w1, w2, t1, t2
    est += 9 * Cp * T * cd_bytes                        # im2col scratch
    est += 8 * Cp * T * 4                               # f32 value temporaries
    return int(est * 1.25) + (8 << 20)                  # compiler headroom


def residual_block_forward(x_nchw, params, compute_dtype=jnp.float32,
                           batch_tile=None):
    """Full ResidualBlock forward (eval semantics).  x_nchw: (N, C, H, W)."""
    N, C, H, W = x_nchw.shape
    HW = H * W
    eps = params["eps"]

    if params["conv1_w"].shape[0] != C or params["conv2_w"].shape[0] != C:
        raise ValueError("ResidualBlock requires in_channels == out_channels "
                         "(BatchNorm2d(in_channels) + residual add).")

    cd_bytes = jnp.dtype(compute_dtype).itemsize
    sub = 8 * (4 // cd_bytes)              # sublane quantum: 8 (f32), 16 (bf16)
    Cp = ((C + sub - 1) // sub) * sub      # padded channels -> aligned taps

    # conv1 output channels are padded to Cp too (zero rows / zero shift), so
    # the intermediate y is born with aligned, exactly-zero pad rows.
    w1, t1 = _fold_conv_bn(params["conv1_w"], params["conv1_b"],
                           params["bn1_gamma"], params["bn1_beta"],
                           params["bn1_mean"], params["bn1_var"], eps,
                           Cp, Cp, compute_dtype)
    w2, t2 = _fold_conv_bn(params["conv2_w"], params["conv2_b"],
                           params["bn2_gamma"], params["bn2_beta"],
                           params["bn2_mean"], params["bn2_var"], eps,
                           Cp, C, compute_dtype)

    if batch_tile is None:
        batch_tile = _pick_batch_tile(N, HW, Cp, cd_bytes)
    if N % batch_tile:
        raise ValueError(f"batch_tile={batch_tile} must divide N={N}")
    B = batch_tile
    T = B * HW

    # NCHW stays NCHW: merging (H, W) -> HW is free; the channel pad (only when
    # C % sub != 0) is one small HBM copy.
    x_flat = x_nchw.reshape(N, C, HW)
    if Cp != C:
        x_flat = jnp.pad(x_flat, ((0, 0), (0, Cp - C), (0, 0)))

    # Per-tap halo masks (periodic per image over the concatenated lane axis):
    # may output pixel p read its (dh-1, dw-1) neighbour inside its own image?
    pix = jnp.arange(T, dtype=jnp.int32) % HW
    ow, oh = pix % W, pix // W
    ones = jnp.ones((T,), bool)
    m_h = (ow >= 1, ones, ow <= W - 2)
    m_v = (oh >= 1, ones, oh <= H - 2)
    tap_masks = jnp.stack([m_v[dh] & m_h[dw]
                           for dh in range(3) for dw in range(3)]
                          ).astype(jnp.float32)              # (9, T)

    kernel = functools.partial(_resblock_kernel, W=W,
                               compute_dtype=compute_dtype)
    out_flat = pl.pallas_call(
        kernel,
        out_shape=jax.ShapeDtypeStruct((N, C, HW), x_nchw.dtype),
        grid=(N // B,),
        in_specs=[
            pl.BlockSpec((B, Cp, HW), lambda n: (n, 0, 0)),   # x (+ residual)
            pl.BlockSpec((9, T), lambda n: (0, 0)),           # halo masks
            pl.BlockSpec((Cp, 9 * Cp), lambda n: (0, 0)),     # folded w1
            pl.BlockSpec((Cp, 1), lambda n: (0, 0)),          # folded shift1
            pl.BlockSpec((C, 9 * Cp), lambda n: (0, 0)),      # folded w2
            pl.BlockSpec((C, 1), lambda n: (0, 0)),           # folded shift2
        ],
        out_specs=pl.BlockSpec((B, C, HW), lambda n: (n, 0, 0)),
        scratch_shapes=[pltpu.VMEM((9 * Cp, T), compute_dtype)],
        compiler_params=pltpu.CompilerParams(
            # Batch blocks are independent -> shardable across v7x's 2 TCs.
            dimension_semantics=("parallel",),
            vmem_limit_bytes=_vmem_limit_bytes(
                B, C, Cp, HW, x_nchw.dtype.itemsize, cd_bytes)),
    )(x_flat, tap_masks, w1, t1, w2, t2)
    # TODO(synk): for very large C*H*W (v7x: 64 MiB VMEM) add an H*W band loop
    # reading halo columns from the resident x/y instead of whole images.
    return out_flat.reshape(N, C, H, W)


def init_params(key, in_channels, out_channels, eps=1e-5):
    """Deterministic synthetic parameters (shapes follow the nn.Module)."""
    ks = jax.random.split(key, 10)
    fan_in = in_channels * 9
    bound = 1.0 / (fan_in ** 0.5)

    def u(k, shape, lo, hi):
        return jax.random.uniform(k, shape, jnp.float32, lo, hi)

    return {
        "conv1_w": u(ks[0], (out_channels, in_channels, 3, 3), -bound, bound),
        "conv1_b": u(ks[1], (out_channels,), -bound, bound),
        "conv2_w": u(ks[2], (out_channels, in_channels, 3, 3), -bound, bound),
        "conv2_b": u(ks[3], (out_channels,), -bound, bound),
        # Non-trivial BN stats so the folding is actually exercised.
        "bn1_gamma": u(ks[4], (out_channels,), 0.5, 1.5),
        "bn1_beta": 0.1 * jax.random.normal(ks[5], (out_channels,), jnp.float32),
        "bn1_mean": 0.1 * jax.random.normal(ks[6], (out_channels,), jnp.float32),
        "bn1_var": u(ks[7], (out_channels,), 0.5, 1.5),
        "bn2_gamma": u(ks[8], (out_channels,), 0.5, 1.5),
        "bn2_beta": jnp.zeros((out_channels,), jnp.float32),
        "bn2_mean": jnp.zeros((out_channels,), jnp.float32),
        "bn2_var": jnp.ones((out_channels,), jnp.float32),
        "eps": eps,
    }


def _reference_forward(x, p):
    """Pure-JAX reference (NCHW lax conv) for correctness checking."""
    def conv_bn(inp, w, b, gamma, beta, mean, var, eps):
        y = lax.conv_general_dilated(
            inp, w, window_strides=(1, 1), padding=((1, 1), (1, 1)),
            dimension_numbers=("NCHW", "OIHW", "NCHW"),
            precision=lax.Precision.HIGHEST)
        y = y + b[None, :, None, None]
        scale = gamma / jnp.sqrt(var + eps)
        shift = beta - mean * scale
        return y * scale[None, :, None, None] + shift[None, :, None, None]

    y = conv_bn(x, p["conv1_w"], p["conv1_b"], p["bn1_gamma"], p["bn1_beta"],
                p["bn1_mean"], p["bn1_var"], p["eps"])
    y = jnp.maximum(y, 0.0)
    z = conv_bn(y, p["conv2_w"], p["conv2_b"], p["bn2_gamma"], p["bn2_beta"],
                p["bn2_mean"], p["bn2_var"], p["eps"])
    return z + x


if __name__ == "__main__":
    N, C, H, W = 2, 4, 16, 16            # in_channels == out_channels == C
    key = jax.random.PRNGKey(0)
    kx, kp = jax.random.split(key)
    x = jax.random.normal(kx, (N, C, H, W), jnp.float32)
    params = init_params(kp, C, C)

    ref = jax.block_until_ready(_reference_forward(x, params))

    # f32 path, default batching heuristic (one image per grid step here).
    out = jax.block_until_ready(residual_block_forward(x, params))
    assert out.shape == (N, C, H, W) and out.dtype == x.dtype
    assert jnp.allclose(out, ref, atol=1e-4, rtol=1e-4), "f32 mismatch vs ref"

    # f32 path, two images per grid step: exercises the lane-concatenated
    # batch-blocking path (wider matmul N dim, cross-image wrap masking).
    out_b2 = jax.block_until_ready(
        residual_block_forward(x, params, batch_tile=2))
    assert jnp.allclose(out_b2, ref, atol=1e-4, rtol=1e-4), "batch-tile mismatch"

    # bf16 MXU inputs (native on v5e/v6e/v7x): bf16 weights + bf16 im2col
    # scratch, f32 accumulation and epilogue.
    out_bf16 = jax.block_until_ready(
        residual_block_forward(x, params, compute_dtype=jnp.bfloat16))
    assert jnp.allclose(out_bf16, ref, atol=1e-1, rtol=1e-1), "bf16 mismatch"

    print("KERNEL_OK")
</pallas_src>

<mosaic_0001>
module attributes {stable_mosaic.version = 11 : i64} {
  func.func @_resblock_kernel(%arg0: i32, %arg1: memref<1x8x256xf32, #tpu.memory_space<vmem>>, %arg2: memref<9x256xf32, #tpu.memory_space<vmem>>, %arg3: memref<8x72xf32, #tpu.memory_space<vmem>>, %arg4: memref<8x1xf32, #tpu.memory_space<vmem>>, %arg5: memref<4x72xf32, #tpu.memory_space<vmem>>, %arg6: memref<4x1xf32, #tpu.memory_space<vmem>>, %arg7: memref<1x4x256xf32, #tpu.memory_space<vmem>>, %arg8: memref<72x256xf32, #tpu.memory_space<vmem>>) attributes {dimension_semantics = [#tpu.dimension_semantics<parallel>], iteration_bounds = array<i64: 2>, scalar_prefetch = 0 : i64, scratch_operands = 1 : i64, tpu.core_type = #tpu.core_type<tc>, window_params = [{transform_indices = @transform_0, window_bounds = array<i64: 1, 8, 256>}, {pipeline_mode = #tpu.pipeline_mode<synchronous>, transform_indices = @transform_1, window_bounds = array<i64: 9, 256>}, {pipeline_mode = #tpu.pipeline_mode<synchronous>, transform_indices = @transform_2, window_bounds = array<i64: 8, 72>}, {pipeline_mode = #tpu.pipeline_mode<synchronous>, transform_indices = @transform_3, window_bounds = array<i64: 8, 1>}, {pipeline_mode = #tpu.pipeline_mode<synchronous>, transform_indices = @transform_4, window_bounds = array<i64: 4, 72>}, {pipeline_mode = #tpu.pipeline_mode<synchronous>, transform_indices = @transform_5, window_bounds = array<i64: 4, 1>}, {transform_indices = @transform_6, window_bounds = array<i64: 1, 4, 256>}]} {
    %c0 = arith.constant 0 : index
    %c0_0 = arith.constant 0 : index
    %c0_1 = arith.constant 0 : index
    %0 = vector.load %arg1[%c0, %c0_0, %c0_1] : memref<1x8x256xf32, #tpu.memory_space<vmem>>, vector<1x8x256xf32>
    %1 = vector.shape_cast %0 : vector<1x8x256xf32> to vector<8x256xf32>
    %c17_i32 = arith.constant 17 : i32
    %2 = tpu.dynamic_rotate %1 by %c17_i32 dim 1 : vector<8x256xf32>, i32 -> vector<8x256xf32>
    %c0_2 = arith.constant 0 : index
    %c0_3 = arith.constant 0 : index
    %3 = vector.load %arg2[%c0_2, %c0_3] : memref<9x256xf32, #tpu.memory_space<vmem>>, vector<1x256xf32>
    %4 = vector.broadcast %3 : vector<1x256xf32> to vector<8x256xf32>
    %5 = arith.mulf %2, %4 : vector<8x256xf32>
    %c0_4 = arith.constant 0 : index
    %c0_5 = arith.constant 0 : index
    %6 = vector.load %arg8[%c0_4, %c0_5] : memref<72x256xf32, #tpu.memory_space<vmem>>, vector<8x256xf32>
    tpu.vector_store %arg8[%c0_4, %c0_5], %5 {strides = array<i32>} : memref<72x256xf32, #tpu.memory_space<vmem>>, vector<8x256xf32>,
    %c16_i32 = arith.constant 16 : i32
    %7 = tpu.dynamic_rotate %1 by %c16_i32 dim 1 : vector<8x256xf32>, i32 -> vector<8x256xf32>
    %c1 = arith.constant 1 : index
    %c0_6 = arith.constant 0 : index
    %8 = vector.load %arg2[%c1, %c0_6] : memref<9x256xf32, #tpu.memory_space<vmem>>, vector<1x256xf32>
    %9 = vector.broadcast %8 : vector<1x256xf32> to vector<8x256xf32>
    %10 = arith.mulf %7, %9 : vector<8x256xf32>
    %c8 = arith.constant 8 : index
    %c0_7 = arith.constant 0 : index
    %11 = vector.load %arg8[%c8, %c0_7] : memref<72x256xf32, #tpu.memory_space<vmem>>, vector<8x256xf32>
    tpu.vector_store %arg8[%c8, %c0_7], %10 {strides = array<i32>} : memref<72x256xf32, #tpu.memory_space<vmem>>, vector<8x256xf32>,
    %c15_i32 = arith.constant 15 : i32
    %12 = tpu.dynamic_rotate %1 by %c15_i32 dim 1 : vector<8x256xf32>, i32 -> vector<8x256xf32>
    %c2 = arith.constant 2 : index
    %c0_8 = arith.constant 0 : index
    %13 = vector.load %arg2[%c2, %c0_8] : memref<9x256xf32, #tpu.memory_space<vmem>>, vector<1x256xf32>
    %14 = vector.broadcast %13 : vector<1x256xf32> to vector<8x256xf32>
    %15 = arith.mulf %12, %14 : vector<8x256xf32>
    %c16 = arith.constant 16 : index
    %c0_9 = arith.constant 0 : index
    %16 = vector.load %arg8[%c16, %c0_9] : memref<72x256xf32, #tpu.memory_space<vmem>>, vector<8x256xf32>
    tpu.vector_store %arg8[%c16, %c0_9], %15 {strides = array<i32>} : memref<72x256xf32, #tpu.memory_space<vmem>>, vector<8x256xf32>,
    %c1_i32 = arith.constant 1 : i32
    %17 = tpu.dynamic_rotate %1 by %c1_i32 dim 1 : vector<8x256xf32>, i32 -> vector<8x256xf32>
    %c3 = arith.constant 3 : index
    %c0_10 = arith.constant 0 : index
    %18 = vector.load %arg2[%c3, %c0_10] : memref<9x256xf32, #tpu.memory_space<vmem>>, vector<1x256xf32>
    %19 = vector.broadcast %18 : vector<1x256xf32> to vector<8x256xf32>
    %20 = arith.mulf %17, %19 : vector<8x256xf32>
    %c24 = arith.constant 24 : index
    %c0_11 = arith.constant 0 : index
    %21 = vector.load %arg8[%c24, %c0_11] : memref<72x256xf32, #tpu.memory_space<vmem>>, vector<8x256xf32>
    tpu.vector_store %arg8[%c24, %c0_11], %20 {strides = array<i32>} : memref<72x256xf32, #tpu.memory_space<vmem>>, vector<8x256xf32>,
    %c32 = arith.constant 32 : index
    %c0_12 = arith.constant 0 : index
    %22 = vector.load %arg8[%c32, %c0_12] : memref<72x256xf32, #tpu.memory_space<vmem>>, vector<8x256xf32>
    tpu.vector_store %arg8[%c32, %c0_12], %1 {strides = array<i32>} : memref<72x256xf32, #tpu.memory_space<vmem>>, vector<8x256xf32>,
    %c255_i32 = arith.constant 255 : i32
    %23 = tpu.dynamic_rotate %1 by %c255_i32 dim 1 : vector<8x256xf32>, i32 -> vector<8x256xf32>
    %c5 = arith.constant 5 : index
    %c0_13 = arith.constant 0 : index
    %24 = vector.load %arg2[%c5, %c0_13] : memref<9x256xf32, #tpu.memory_space<vmem>>, vector<1x256xf32>
    %25 = vector.broadcast %24 : vector<1x256xf32> to vector<8x256xf32>
    %26 = arith.mulf %23, %25 : vector<8x256xf32>
    %c40 = arith.constant 40 : index
    %c0_14 = arith.constant 0 : index
    %27 = vector.load %arg8[%c40, %c0_14] : memref<72x256xf32, #tpu.memory_space<vmem>>, vector<8x256xf32>
    tpu.vector_store %arg8[%c40, %c0_14], %26 {strides = array<i32>} : memref<72x256xf32, #tpu.memory_space<vmem>>, vector<8x256xf32>,
    %c241_i32 = arith.constant 241 : i32
    %28 = tpu.dynamic_rotate %1 by %c241_i32 dim 1 : vector<8x256xf32>, i32 -> vector<8x256xf32>
    %c6 = arith.constant 6 : index
    %c0_15 = arith.constant 0 : index
    %29 = vector.load %arg2[%c6, %c0_15] : memref<9x256xf32, #tpu.memory_space<vmem>>, vector<1x256xf32>
    %30 = vector.broadcast %29 : vector<1x256xf32> to vector<8x256xf32>
    %31 = arith.mulf %28, %30 : vector<8x256xf32>
    %c48 = arith.constant 48 : index
    %c0_16 = arith.constant 0 : index
    %32 = vector.load %arg8[%c48, %c0_16] : memref<72x256xf32, #tpu.memory_space<vmem>>, vector<8x256xf32>
    tpu.vector_store %arg8[%c48, %c0_16], %31 {strides = array<i32>} : memref<72x256xf32, #tpu.memory_space<vmem>>, vector<8x256xf32>,
    %c240_i32 = arith.constant 240 : i32
    %33 = tpu.dynamic_rotate %1 by %c240_i32 dim 1 : vector<8x256xf32>, i32 -> vector<8x256xf32>
    %c7 = arith.constant 7 : index
    %c0_17 = arith.constant 0 : index
    %34 = vector.load %arg2[%c7, %c0_17] : memref<9x256xf32, #tpu.memory_space<vmem>>, vector<1x256xf32>
    %35 = vector.broadcast %34 : vector<1x256xf32> to vector<8x256xf32>
    %36 = arith.mulf %33, %35 : vector<8x256xf32>
    %c56 = arith.constant 56 : index
    %c0_18 = arith.constant 0 : index
    %37 = vector.load %arg8[%c56, %c0_18] : memref<72x256xf32, #tpu.memory_space<vmem>>, vector<8x256xf32>
    tpu.vector_store %arg8[%c56, %c0_18], %36 {strides = array<i32>} : memref<72x256xf32, #tpu.memory_space<vmem>>, vector<8x256xf32>,
    %c239_i32 = arith.constant 239 : i32
    %38 = tpu.dynamic_rotate %1 by %c239_i32 dim 1 : vector<8x256xf32>, i32 -> vector<8x256xf32>
    %c8_19 = arith.constant 8 : index
    %c0_20 = arith.constant 0 : index
    %39 = vector.load %arg2[%c8_19, %c0_20] : memref<9x256xf32, #tpu.memory_space<vmem>>, vector<1x256xf32>
    %40 = vector.broadcast %39 : vector<1x256xf32> to vector<8x256xf32>
    %41 = arith.mulf %38, %40 : vector<8x256xf32>
    %c64 = arith.constant 64 : index
    %c0_21 = arith.constant 0 : index
    %42 = vector.load %arg8[%c64, %c0_21] : memref<72x256xf32, #tpu.memory_space<vmem>>, vector<8x256xf32>
    tpu.vector_store %arg8[%c64, %c0_21], %41 {strides = array<i32>} : memref<72x256xf32, #tpu.memory_space<vmem>>, vector<8x256xf32>,
    %c0_22 = arith.constant 0 : index
    %c0_23 = arith.constant 0 : index
    %43 = vector.load %arg3[%c0_22, %c0_23] : memref<8x72xf32, #tpu.memory_space<vmem>>, vector<8x72xf32>
    %c0_24 = arith.constant 0 : index
    %c0_25 = arith.constant 0 : index
    %44 = vector.load %arg8[%c0_24, %c0_25] : memref<72x256xf32, #tpu.memory_space<vmem>>, vector<72x256xf32>
    %cst = arith.constant dense<0.000000e+00> : vector<8x256xf32>
    %45 = tpu.matmul %43, %44, %cst {dimension_numbers = #tpu.dot_dimension_numbers<[1], [0], [0], [1], [0, 0, 1, 1], [], []>} : vector<8x72xf32>, vector<72x256xf32>, vector<8x256xf32> -> vector<8x256xf32>
    %c0_26 = arith.constant 0 : index
    %c0_27 = arith.constant 0 : index
    %46 = vector.load %arg4[%c0_26, %c0_27] : memref<8x1xf32, #tpu.memory_space<vmem>>, vector<8x1xf32>
    %47 = vector.broadcast %46 : vector<8x1xf32> to vector<8x256xf32>
    %48 = arith.addf %45, %47 : vector<8x256xf32>
    %cst_28 = arith.constant 0.000000e+00 : f32
    %49 = vector.broadcast %cst_28 : f32 to vector<8x256xf32>
    %50 = arith.maximumf %48, %49 : vector<8x256xf32>
    %c17_i32_29 = arith.constant 17 : i32
    %51 = tpu.dynamic_rotate %50 by %c17_i32_29 dim 1 : vector<8x256xf32>, i32 -> vector<8x256xf32>
    %c0_30 = arith.constant 0 : index
    %c0_31 = arith.constant 0 : index
    %52 = vector.load %arg2[%c0_30, %c0_31] : memref<9x256xf32, #tpu.memory_space<vmem>>, vector<1x256xf32>
    %53 = vector.broadcast %52 : vector<1x256xf32> to vector<8x256xf32>
    %54 = arith.mulf %51, %53 : vector<8x256xf32>
    %c0_32 = arith.constant 0 : index
    %c0_33 = arith.constant 0 : index
    %55 = vector.load %arg8[%c0_32, %c0_33] : memref<72x256xf32, #tpu.memory_space<vmem>>, vector<8x256xf32>
    tpu.vector_store %arg8[%c0_32, %c0_33], %54 {strides = array<i32>} : memref<72x256xf32, #tpu.memory_space<vmem>>, vector<8x256xf32>,
    %c16_i32_34 = arith.constant 16 : i32
    %56 = tpu.dynamic_rotate %50 by %c16_i32_34 dim 1 : vector<8x256xf32>, i32 -> vector<8x256xf32>
    %c1_35 = arith.constant 1 : index
    %c0_36 = arith.constant 0 : index
    %57 = vector.load %arg2[%c1_35, %c0_36] : memref<9x256xf32, #tpu.memory_space<vmem>>, vector<1x256xf32>
    %58 = vector.broadcast %57 : vector<1x256xf32> to vector<8x256xf32>
    %59 = arith.mulf %56, %58 : vector<8x256xf32>
    %c8_37 = arith.constant 8 : index
    %c0_38 = arith.constant 0 : index
    %60 = vector.load %arg8[%c8_37, %c0_38] : memref<72x256xf32, #tpu.memory_space<vmem>>, vector<8x256xf32>
    tpu.vector_store %arg8[%c8_37, %c0_38], %59 {strides = array<i32>} : memref<72x256xf32, #tpu.memory_space<vmem>>, vector<8x256xf32>,
    %c15_i32_39 = arith.constant 15 : i32
    %61 = tpu.dynamic_rotate %50 by %c15_i32_39 dim 1 : vector<8x256xf32>, i32 -> vector<8x256xf32>
    %c2_40 = arith.constant 2 : index
    %c0_41 = arith.constant 0 : index
    %62 = vector.load %arg2[%c2_40, %c0_41] : memref<9x256xf32, #tpu.memory_space<vmem>>, vector<1x256xf32>
    %63 = vector.broadcast %62 : vector<1x256xf32> to vector<8x256xf32>
    %64 = arith.mulf %61, %63 : vector<8x256xf32>
    %c16_42 = arith.constant 16 : index
    %c0_43 = arith.constant 0 : index
    %65 = vector.load %arg8[%c16_42, %c0_43] : memref<72x256xf32, #tpu.memory_space<vmem>>, vector<8x256xf32>
    tpu.vector_store %arg8[%c16_42, %c0_43], %64 {strides = array<i32>} : memref<72x256xf32, #tpu.memory_space<vmem>>, vector<8x256xf32>,
    %c1_i32_44 = arith.constant 1 : i32
    %66 = tpu.dynamic_rotate %50 by %c1_i32_44 dim 1 : vector<8x256xf32>, i32 -> vector<8x256xf32>
    %c3_45 = arith.constant 3 : index
    %c0_46 = arith.constant 0 : index
    %67 = vector.load %arg2[%c3_45, %c0_46] : memref<9x256xf32, #tpu.memory_space<vmem>>, vector<1x256xf32>
    %68 = vector.broadcast %67 : vector<1x256xf32> to vector<8x256xf32>
    %69 = arith.mulf %66, %68 : vector<8x256xf32>
    %c24_47 = arith.constant 24 : index
    %c0_48 = arith.constant 0 : index
    %70 = vector.load %arg8[%c24_47, %c0_48] : memref<72x256xf32, #tpu.memory_space<vmem>>, vector<8x256xf32>
    tpu.vector_store %arg8[%c24_47, %c0_48], %69 {strides = array<i32>} : memref<72x256xf32, #tpu.memory_space<vmem>>, vector<8x256xf32>,
    %c32_49 = arith.constant 32 : index
    %c0_50 = arith.constant 0 : index
    %71 = vector.load %arg8[%c32_49, %c0_50] : memref<72x256xf32, #tpu.memory_space<vmem>>, vector<8x256xf32>
    tpu.vector_store %arg8[%c32_49, %c0_50], %50 {strides = array<i32>} : memref<72x256xf32, #tpu.memory_space<vmem>>, vector<8x256xf32>,
    %c255_i32_51 = arith.constant 255 : i32
    %72 = tpu.dynamic_rotate %50 by %c255_i32_51 dim 1 : vector<8x256xf32>, i32 -> vector<8x256xf32>
    %c5_52 = arith.constant 5 : index
    %c0_53 = arith.constant 0 : index
    %73 = vector.load %arg2[%c5_52, %c0_53] : memref<9x256xf32, #tpu.memory_space<vmem>>, vector<1x256xf32>
    %74 = vector.broadcast %73 : vector<1x256xf32> to vector<8x256xf32>
    %75 = arith.mulf %72, %74 : vector<8x256xf32>
    %c40_54 = arith.constant 40 : index
    %c0_55 = arith.constant 0 : index
    %76 = vector.load %arg8[%c40_54, %c0_55] : memref<72x256xf32, #tpu.memory_space<vmem>>, vector<8x256xf32>
    tpu.vector_store %arg8[%c40_54, %c0_55], %75 {strides = array<i32>} : memref<72x256xf32, #tpu.memory_space<vmem>>, vector<8x256xf32>,
    %c241_i32_56 = arith.constant 241 : i32
    %77 = tpu.dynamic_rotate %50 by %c241_i32_56 dim 1 : vector<8x256xf32>, i32 -> vector<8x256xf32>
    %c6_57 = arith.constant 6 : index
    %c0_58 = arith.constant 0 : index
    %78 = vector.load %arg2[%c6_57, %c0_58] : memref<9x256xf32, #tpu.memory_space<vmem>>, vector<1x256xf32>
    %79 = vector.broadcast %78 : vector<1x256xf32> to vector<8x256xf32>
    %80 = arith.mulf %77, %79 : vector<8x256xf32>
    %c48_59 = arith.constant 48 : index
    %c0_60 = arith.constant 0 : index
    %81 = vector.load %arg8[%c48_59, %c0_60] : memref<72x256xf32, #tpu.memory_space<vmem>>, vector<8x256xf32>
    tpu.vector_store %arg8[%c48_59, %c0_60], %80 {strides = array<i32>} : memref<72x256xf32, #tpu.memory_space<vmem>>, vector<8x256xf32>,
    %c240_i32_61 = arith.constant 240 : i32
    %82 = tpu.dynamic_rotate %50 by %c240_i32_61 dim 1 : vector<8x256xf32>, i32 -> vector<8x256xf32>
    %c7_62 = arith.constant 7 : index
    %c0_63 = arith.constant 0 : index
    %83 = vector.load %arg2[%c7_62, %c0_63] : memref<9x256xf32, #tpu.memory_space<vmem>>, vector<1x256xf32>
    %84 = vector.broadcast %83 : vector<1x256xf32> to vector<8x256xf32>
    %85 = arith.mulf %82, %84 : vector<8x256xf32>
    %c56_64 = arith.constant 56 : index
    %c0_65 = arith.constant 0 : index
    %86 = vector.load %arg8[%c56_64, %c0_65] : memref<72x256xf32, #tpu.memory_space<vmem>>, vector<8x256xf32>
    tpu.vector_store %arg8[%c56_64, %c0_65], %85 {strides = array<i32>} : memref<72x256xf32, #tpu.memory_space<vmem>>, vector<8x256xf32>,
    %c239_i32_66 = arith.constant 239 : i32
    %87 = tpu.dynamic_rotate %50 by %c239_i32_66 dim 1 : vector<8x256xf32>, i32 -> vector<8x256xf32>
    %c8_67 = arith.constant 8 : index
    %c0_68 = arith.constant 0 : index
    %88 = vector.load %arg2[%c8_67, %c0_68] : memref<9x256xf32, #tpu.memory_space<vmem>>, vector<1x256xf32>
    %89 = vector.broadcast %88 : vector<1x256xf32> to vector<8x256xf32>
    %90 = arith.mulf %87, %89 : vector<8x256xf32>
    %c64_69 = arith.constant 64 : index
    %c0_70 = arith.constant 0 : index
    %91 = vector.load %arg8[%c64_69, %c0_70] : memref<72x256xf32, #tpu.memory_space<vmem>>, vector<8x256xf32>
    tpu.vector_store %arg8[%c64_69, %c0_70], %90 {strides = array<i32>} : memref<72x256xf32, #tpu.memory_space<vmem>>, vector<8x256xf32>,
    %c0_71 = arith.constant 0 : index
    %c0_72 = arith.constant 0 : index
    %92 = vector.load %arg5[%c0_71, %c0_72] : memref<4x72xf32, #tpu.memory_space<vmem>>, vector<4x72xf32>
    %c0_73 = arith.constant 0 : index
    %c0_74 = arith.constant 0 : index
    %93 = vector.load %arg8[%c0_73, %c0_74] : memref<72x256xf32, #tpu.memory_space<vmem>>, vector<72x256xf32>
    %cst_75 = arith.constant dense<0.000000e+00> : vector<4x256xf32>
    %94 = tpu.matmul %92, %93, %cst_75 {dimension_numbers = #tpu.dot_dimension_numbers<[1], [0], [0], [1], [0, 0, 1, 1], [], []>} : vector<4x72xf32>, vector<72x256xf32>, vector<4x256xf32> -> vector<4x256xf32>
    %c0_76 = arith.constant 0 : index
    %c0_77 = arith.constant 0 : index
    %95 = vector.load %arg6[%c0_76, %c0_77] : memref<4x1xf32, #tpu.memory_space<vmem>>, vector<4x1xf32>
    %96 = vector.broadcast %95 : vector<4x1xf32> to vector<4x256xf32>
    %97 = arith.addf %94, %96 : vector<4x256xf32>
    %98 = vector.extract_strided_slice %1 {offsets = [0, 0], sizes = [4, 256], strides = [1, 1]} : vector<8x256xf32> to vector<4x256xf32>
    %99 = arith.addf %97, %98 : vector<4x256xf32>
    %c0_78 = arith.constant 0 : index
    %c0_79 = arith.constant 0 : index
    %c0_80 = arith.constant 0 : index
    %100 = vector.load %arg7[%c0_78, %c0_79, %c0_80] : memref<1x4x256xf32, #tpu.memory_space<vmem>>, vector<1x4x256xf32>
    %101 = vector.shape_cast %100 : vector<1x4x256xf32> to vector<4x256xf32>
    %102 = vector.shape_cast %99 : vector<4x256xf32> to vector<1x4x256xf32>
    tpu.vector_store %arg7[%c0_78, %c0_79, %c0_80], %102 {strides = array<i32>} : memref<1x4x256xf32, #tpu.memory_space<vmem>>, vector<1x4x256xf32>,
    return
  }
  func.func @transform_0(%arg0: i32) -> (i32, i32, i32) {
    %c0_i32 = arith.constant 0 : i32
    %c0_i32_0 = arith.constant 0 : i32
    %c0_i32_1 = arith.constant 0 : i32
    return %arg0, %c0_i32, %c0_i32_0 : i32, i32, i32
  }
  func.func @transform_1(%arg0: i32) -> (i32, i32) {
    %c0_i32 = arith.constant 0 : i32
    %c0_i32_0 = arith.constant 0 : i32
    %c0_i32_1 = arith.constant 0 : i32
    return %c0_i32, %c0_i32_0 : i32, i32
  }
  func.func @transform_2(%arg0: i32) -> (i32, i32) {
    %c0_i32 = arith.constant 0 : i32
    %c0_i32_0 = arith.constant 0 : i32
    %c0_i32_1 = arith.constant 0 : i32
    return %c0_i32, %c0_i32_0 : i32, i32
  }
  func.func @transform_3(%arg0: i32) -> (i32, i32) {
    %c0_i32 = arith.constant 0 : i32
    %c0_i32_0 = arith.constant 0 : i32
    %c0_i32_1 = arith.constant 0 : i32
    return %c0_i32, %c0_i32_0 : i32, i32
  }
  func.func @transform_4(%arg0: i32) -> (i32, i32) {
    %c0_i32 = arith.constant 0 : i32
    %c0_i32_0 = arith.constant 0 : i32
    %c0_i32_1 = arith.constant 0 : i32
    return %c0_i32, %c0_i32_0 : i32, i32
  }
  func.func @transform_5(%arg0: i32) -> (i32, i32) {
    %c0_i32 = arith.constant 0 : i32
    %c0_i32_0 = arith.constant 0 : i32
    %c0_i32_1 = arith.constant 0 : i32
    return %c0_i32, %c0_i32_0 : i32, i32
  }
  func.func @transform_6(%arg0: i32) -> (i32, i32, i32) {
    %c0_i32 = arith.constant 0 : i32
    %c0_i32_0 = arith.constant 0 : i32
    %c0_i32_1 = arith.constant 0 : i32
    return %arg0, %c0_i32, %c0_i32_0 : i32, i32, i32
  }
}

</mosaic_0001>

<llo_original>
// kernel: tpu_custom_call.1
$region0: #{tpu_custom_call.1}
  #allocation0 [shape = 'u32[]', space=smem, size = 0x4, offset = 0x4, fixed_abs, tag = 'smem constant byte address 0x4 - core index']
  #allocation1 [shape = 'u32[72,128]{1,0:T(1,128)}', space=vmem, size = 0x9000, scoped, tag = 'internal scratch']
  #allocation2 [shape = 'f32[72,256]{1,0:T(8,128)}', space=vmem, size = 0x12000, scoped, tag = 'scratch operand']
  %s0 = inlined_call_operand.hbm [shape: f32[2,8,256], index: 0, kind: input, shape index: {}]
  %s1 = inlined_call_operand.hbm [shape: f32[9,256], index: 1, kind: input, shape index: {}]
  %s2 = inlined_call_operand.vmem [shape: f32[8,72], index: 2, kind: input, shape index: {}]
  %s3 = inlined_call_operand.vmem [shape: f32[8,1], index: 3, kind: input, shape index: {}]
  %s4 = inlined_call_operand.vmem [shape: f32[4,72], index: 4, kind: input, shape index: {}]
  %s5 = inlined_call_operand.vmem [shape: f32[4,1], index: 5, kind: input, shape index: {}]
  %s6 = inlined_call_operand.hbm [shape: f32[2,4,256], index: 6, kind: output, shape index: {}]
  %s7 = sld [smem:[#allocation0]]
  $region65: #{tpu_custom_call.1} parent=0
    _
  %s9 = ssub.s32 1, %s7
  %s10 = scalar_select 0, %s9, %s7
  $region1: #{tpu_custom_call.1} parent=0
    #allocation3 [shape = 'u8[16384]{0}', space=vmem, size = 0x4000, scoped, tag = 'input window, operand 0']
    #allocation4 [shape = 's32[2]{0}', space=sflag, size = 0x8, scoped, tag = 'scoped memory for tpu_custom_call.1']
    #allocation5 [shape = 's32[2]{0}', space=sflag, size = 0x8, scoped, tag = 'scoped memory for tpu_custom_call.1']
    #allocation6 [shape = 'u8[16384]{0}', space=vmem, size = 0x4000, scoped, tag = 'input window, operand 1, single buffered']
    #allocation7 [shape = 's32[1]{0}', space=sflag, size = 0x4, scoped, tag = 'scoped memory for tpu_custom_call.1']
    #allocation8 [shape = 'u8[8192]{0}', space=vmem, size = 0x2000, scoped, tag = 'output window, operand 0']
    %11 = vsyncpa [#allocation4], 0
    %s12 = scalar_lea.sflag [#allocation4], 1
    %13 = vsyncpa %s12, 0
    %14 = vsyncpa [#allocation7], 0
    %15 = vsyncpa [#allocation5], 0
    %s16 = scalar_lea.sflag [#allocation5], 1
    %17 = vsyncpa %s16, 0
    loop: start=0, step=1, limit=4
    $region2: #{tpu_custom_call.1} parent=1 // loop_pre_header
      _
    $region3: #{tpu_custom_call.1} parent=1 // loop_header
      %s19 = sphi 0, %s23
      %p20 = scmp.ge.s32.totalorder %s19, 4
      %s29 = sphi 0, %s31
      %s32 = sphi 0, %s29
      %s33 = sphi 0, %s32
      %s49 = sphi 0, %s33
      %s53 = sphi 0, %s53
      %s55 = sphi 0, %s53
      %s56 = sphi 0, %s55
      %s70 = sphi 0, %s56
      %s74 = sphi 0, %s74
      %s76 = sphi 0, %s74
      %s77 = sphi 0, %s76
      %s91 = sphi 0, %s77
      %s95 = sphi 0, %s95
      %s97 = sphi 0, %s95
      %s98 = sphi 0, %s97
      %s112 = sphi 0, %s98
      %s116 = sphi 0, %s116
      %s118 = sphi 0, %s116
      %s119 = sphi 0, %s118
      %s133 = sphi 0, %s119
      %s137 = sphi 0, %s137
      %s139 = sphi 0, %s137
      %s140 = sphi 0, %s139
      %s154 = sphi 0, %s140
      %s160 = sphi 0, %s162
      %s163 = sphi 0, %s160
      %s164 = sphi 0, %s163
      %s180 = sphi 0, %s164
    $region4: #{tpu_custom_call.1} parent=1 // loop_header_branch
      %22 = sbr.rel (%p20) target = $region8
    $region5: #{tpu_custom_call.1} parent=1 // loop_body
      %s24 = ssub.s32 %s19, 1
      %s25 = ssub.s32 %s19, 2
      %s26 = sadd.s32 %s19, 1
      %s27 = ssub.s32 %s19, %s26
      %p28 = scmp.eq.s32.totalorder %s27, 0
      %s30 = sadd.s32 %s29, 1
      %s31 = scalar_select %p28, %s29, %s30
      %p34 = pneg %p28
      %p35 = scmp.eq.s32.totalorder %s19, 1
      %p36 = por %p34, %p35
      %p37 = scmp.ne.s32.totalorder %s29, %s32
      %p38 = scmp.eq.s32.totalorder %s19, 0
      %p39 = por %p37, %p38
      %p40 = scmp.ne.s32.totalorder %s29, %s32
      %p41 = scmp.eq.s32.totalorder %s24, 1
      %p42 = por %p40, %p41
      %p43 = scmp.ne.s32.totalorder %s32, %s33
      %p44 = scmp.eq.s32.totalorder %s24, 0
      %p45 = por %p43, %p44
      %p46 = scmp.ne.s32.totalorder %s32, %s33
      %p47 = scmp.eq.s32.totalorder %s25, 1
      %p48 = por %p46, %p47
      %p50 = scmp.ne.s32.totalorder %s33, %s49
      %p51 = scmp.eq.s32.totalorder %s25, 0
      %p52 = por %p50, %p51
      %s54 = sadd.s32 %s53, 1
      %p57 = scmp.eq.s32.totalorder %s19, 1
      %p58 = scmp.ne.s32.totalorder %s53, %s55
      %p59 = scmp.eq.s32.totalorder %s19, 0
      %p60 = por %p58, %p59
      %p61 = scmp.ne.s32.totalorder %s53, %s55
      %p62 = scmp.eq.s32.totalorder %s24, 1
      %p63 = por %p61, %p62
      %p64 = scmp.ne.s32.totalorder %s55, %s56
      %p65 = scmp.eq.s32.totalorder %s24, 0
      %p66 = por %p64, %p65
      %p67 = scmp.ne.s32.totalorder %s55, %s56
      %p68 = scmp.eq.s32.totalorder %s25, 1
      %p69 = por %p67, %p68
      %p71 = scmp.ne.s32.totalorder %s56, %s70
      %p72 = scmp.eq.s32.totalorder %s25, 0
      %p73 = por %p71, %p72
      %s75 = sadd.s32 %s74, 1
      %p78 = scmp.eq.s32.totalorder %s19, 1
      %p79 = scmp.ne.s32.totalorder %s74, %s76
      %p80 = scmp.eq.s32.totalorder %s19, 0
      %p81 = por %p79, %p80
      %p82 = scmp.ne.s32.totalorder %s74, %s76
      %p83 = scmp.eq.s32.totalorder %s24, 1
      %p84 = por %p82, %p83
      %p85 = scmp.ne.s32.totalorder %s76, %s77
      %p86 = scmp.eq.s32.totalorder %s24, 0
      %p87 = por %p85, %p86
      %p88 = scmp.ne.s32.totalorder %s76, %s77
      %p89 = scmp.eq.s32.totalorder %s25, 1
      %p90 = por %p88, %p89
      %p92 = scmp.ne.s32.totalorder %s77, %s91
      %p93 = scmp.eq.s32.totalorder %s25, 0
      %p94 = por %p92, %p93
      %s96 = sadd.s32 %s95, 1
      %p99 = scmp.eq.s32.totalorder %s19, 1
      %p100 = scmp.ne.s32.totalorder %s95, %s97
      %p101 = scmp.eq.s32.totalorder %s19, 0
      %p102 = por %p100, %p101
      %p103 = scmp.ne.s32.totalorder %s95, %s97
      %p104 = scmp.eq.s32.totalorder %s24, 1
      %p105 = por %p103, %p104
      %p106 = scmp.ne.s32.totalorder %s97, %s98
      %p107 = scmp.eq.s32.totalorder %s24, 0
      %p108 = por %p106, %p107
      %p109 = scmp.ne.s32.totalorder %s97, %s98
      %p110 = scmp.eq.s32.totalorder %s25, 1
      %p111 = por %p109, %p110
      %p113 = scmp.ne.s32.totalorder %s98, %s112
      %p114 = scmp.eq.s32.totalorder %s25, 0
      %p115 = por %p113, %p114
      %s117 = sadd.s32 %s116, 1
      %p120 = scmp.eq.s32.totalorder %s19, 1
      %p121 = scmp.ne.s32.totalorder %s116, %s118
      %p122 = scmp.eq.s32.totalorder %s19, 0
      %p123 = por %p121, %p122
      %p124 = scmp.ne.s32.totalorder %s116, %s118
      %p125 = scmp.eq.s32.totalorder %s24, 1
      %p126 = por %p124, %p125
      %p127 = scmp.ne.s32.totalorder %s118, %s119
      %p128 = scmp.eq.s32.totalorder %s24, 0
      %p129 = por %p127, %p128
      %p130 = scmp.ne.s32.totalorder %s118, %s119
      %p131 = scmp.eq.s32.totalorder %s25, 1
      %p132 = por %p130, %p131
      %p134 = scmp.ne.s32.totalorder %s119, %s133
      %p135 = scmp.eq.s32.totalorder %s25, 0
      %p136 = por %p134, %p135
      %s138 = sadd.s32 %s137, 1
      %p141 = scmp.eq.s32.totalorder %s19, 1
      %p142 = scmp.ne.s32.totalorder %s137, %s139
      %p143 = scmp.eq.s32.totalorder %s19, 0
      %p144 = por %p142, %p143
      %p145 = scmp.ne.s32.totalorder %s137, %s139
      %p146 = scmp.eq.s32.totalorder %s24, 1
      %p147 = por %p145, %p146
      %p148 = scmp.ne.s32.totalorder %s139, %s140
      %p149 = scmp.eq.s32.totalorder %s24, 0
      %p150 = por %p148, %p149
      %p151 = scmp.ne.s32.totalorder %s139, %s140
      %p152 = scmp.eq.s32.totalorder %s25, 1
      %p153 = por %p151, %p152
      %p155 = scmp.ne.s32.totalorder %s140, %s154
      %p156 = scmp.eq.s32.totalorder %s25, 0
      %p157 = por %p155, %p156
      %s158 = ssub.s32 %s19, %s26
      %p159 = scmp.eq.s32.totalorder %s158, 0
      %s161 = sadd.s32 %s160, 1
      %s162 = scalar_select %p159, %s160, %s161
      %p165 = pneg %p159
      %p166 = scmp.eq.s32.totalorder %s19, 1
      %p167 = por %p165, %p166
      %p168 = scmp.ne.s32.totalorder %s160, %s163
      %p169 = scmp.eq.s32.totalorder %s19, 0
      %p170 = por %p168, %p169
      %p171 = scmp.ne.s32.totalorder %s160, %s163
      %p172 = scmp.eq.s32.totalorder %s24, 1
      %p173 = por %p171, %p172
      %p174 = scmp.ne.s32.totalorder %s163, %s164
      %p175 = scmp.eq.s32.totalorder %s24, 0
      %p176 = por %p174, %p175
      %p177 = scmp.ne.s32.totalorder %s163, %s164
      %p178 = scmp.eq.s32.totalorder %s25, 1
      %p179 = por %p177, %p178
      %p181 = scmp.ne.s32.totalorder %s164, %s180
      %p182 = scmp.eq.s32.totalorder %s25, 0
      %p183 = por %p181, %p182
      %p184 = scmp.le.s32.totalorder 1, %s19
      %p185 = scmp.lt.s32.totalorder %s19, 3
      %p186 = pnand %p184, %p185
      %p187 = pneg %p186
      // Predicated region
      $region9: #{tpu_custom_call.1} parent=5 // pred_check
        _
      $region10: #{tpu_custom_call.1} parent=5 // pred_check_branch
        %189 = sbr.rel (%p186) target = $region12
      $region11: #{tpu_custom_call.1} parent=5 // pred_region
        %s190 = ssub.s32 %s19, 1
        // Predicated region
        $region13: #{tpu_custom_call.1} parent=11 // pred_check
          %p191 = pneg %p66
        $region14: #{tpu_custom_call.1} parent=11 // pred_check_branch
          %193 = sbr.rel (%p191) target = $region16
        $region15: #{tpu_custom_call.1} parent=11 // pred_region
          %195 = vsyncadd [#allocation7], 0
          %s196 = sshll.u32 %s1, 4
          %s197 = int_to_ptr.hbm [resolvable:$true] %s196
          %s198 = sshll.u32 [#allocation6], 4
          %s199 = int_to_ptr.vmem [resolvable:$true] %s198
          %204 = dma.hbm_to_vmem [thread:$0]  %s197, 512, %s199, [#allocation7], 256, 256, 16
        $region16: #{tpu_custom_call.1} parent=11 // pred_fallthru
          _
        // Predicated region
        $region17: #{tpu_custom_call.1} parent=11 // pred_check
          %p205 = pneg %p87
        $region18: #{tpu_custom_call.1} parent=11 // pred_check_branch
          %207 = sbr.rel (%p205) target = $region20
        $region19: #{tpu_custom_call.1} parent=11 // pred_region
          _
        $region20: #{tpu_custom_call.1} parent=11 // pred_fallthru
          _
        // Predicated region
        $region21: #{tpu_custom_call.1} parent=11 // pred_check
          %p208 = pneg %p108
        $region22: #{tpu_custom_call.1} parent=11 // pred_check_branch
          %210 = sbr.rel (%p208) target = $region24
        $region23: #{tpu_custom_call.1} parent=11 // pred_region
          _
        $region24: #{tpu_custom_call.1} parent=11 // pred_fallthru
          _
        // Predicated region
        $region25: #{tpu_custom_call.1} parent=11 // pred_check
          %p211 = pneg %p129
        $region26: #{tpu_custom_call.1} parent=11 // pred_check_branch
          %213 = sbr.rel (%p211) target = $region28
        $region27: #{tpu_custom_call.1} parent=11 // pred_region
          _
        $region28: #{tpu_custom_call.1} parent=11 // pred_fallthru
          _
        // Predicated region
        $region29: #{tpu_custom_call.1} parent=11 // pred_check
          %p214 = pneg %p150
        $region30: #{tpu_custom_call.1} parent=11 // pred_check_branch
          %216 = sbr.rel (%p214) target = $region32
        $region31: #{tpu_custom_call.1} parent=11 // pred_region
          _
        $region32: #{tpu_custom_call.1} parent=11 // pred_fallthru
          _
      $region12: #{tpu_custom_call.1} parent=5 // pred_fallthru
        _
      %p217 = scmp.lt.s32.totalorder %s19, 2
      // Predicated region
      $region33: #{tpu_custom_call.1} parent=5 // pred_check
        %p218 = pneg %p217
      $region34: #{tpu_custom_call.1} parent=5 // pred_check_branch
        %220 = sbr.rel (%p218) target = $region36
      $region35: #{tpu_custom_call.1} parent=5 // pred_region
        // Predicated region
        $region37: #{tpu_custom_call.1} parent=35 // pred_check
          %p221 = pneg %p39
        $region38: #{tpu_custom_call.1} parent=35 // pred_check_branch
          %223 = sbr.rel (%p221) target = $region40
        $region39: #{tpu_custom_call.1} parent=35 // pred_region
          %s224 = sand.u32 %s29, 1
          %s225 = scalar_lea.sflag [#allocation4], %s224
          %s226 = sand.u32 %s29, 1
          %s227 = smul.addr %s226, 16
          %s228 = scalar_lea.vmem [#allocation3], %s227
          %230 = vsyncadd %s225, 0
          %s231 = smul.addr %s19, 2
          %s232 = smul.addr %s231, 8
          %s233 = scalar_lea.hbm %s0, %s232
          %s235 = sshll.u32 %s233, 4
          %s236 = int_to_ptr.hbm [resolvable:$true] %s235
          %s237 = sshll.u32 %s228, 4
          %s238 = int_to_ptr.vmem [resolvable:$true] %s237
          %240 = dma.hbm_to_vmem [thread:$0]  %s236, 256, %s238, %s225
        $region40: #{tpu_custom_call.1} parent=35 // pred_fallthru
          _
      $region36: #{tpu_custom_call.1} parent=5 // pred_fallthru
        _
      %p241 = scmp.le.s32.totalorder 1, %s19
      %p242 = scmp.lt.s32.totalorder %s19, 3
      %p243 = pnand %p241, %p242
      %p244 = pneg %p243
      // Predicated region
      $region41: #{tpu_custom_call.1} parent=5 // pred_check
        _
      $region42: #{tpu_custom_call.1} parent=5 // pred_check_branch
        %246 = sbr.rel (%p243) target = $region44
      $region43: #{tpu_custom_call.1} parent=5 // pred_region
        %s247 = ssub.s32 %s19, 1
        %s248 = sand.u32 %s32, 1
        %s249 = scalar_lea.sflag [#allocation4], %s248
        %s250 = sand.u32 %s32, 1
        %s251 = smul.addr %s250, 16
        %s252 = scalar_lea.vmem [#allocation3], %s251
        // Predicated region
        $region45: #{tpu_custom_call.1} parent=43 // pred_check
          %p253 = pneg %p45
        $region46: #{tpu_custom_call.1} parent=43 // pred_check_branch
          %255 = sbr.rel (%p253) target = $region48
        $region47: #{tpu_custom_call.1} parent=43 // pred_region
          %257 = dma.done %s249, 256
        $region48: #{tpu_custom_call.1} parent=43 // pred_fallthru
          _
        // Predicated region
        $region49: #{tpu_custom_call.1} parent=43 // pred_check
          %p258 = pneg %p66
        $region50: #{tpu_custom_call.1} parent=43 // pred_check_branch
          %260 = sbr.rel (%p258) target = $region52
        $region51: #{tpu_custom_call.1} parent=43 // pred_region
          %262 = dma.done [#allocation7], 512
        $region52: #{tpu_custom_call.1} parent=43 // pred_fallthru
          _
        %s263 = sand.u32 %s32, 1
        %s264 = scalar_lea.sflag [#allocation4], %s263
        %s265 = sand.u32 %s32, 1
        %s266 = smul.addr %s265, 16
        %s267 = scalar_lea.vmem [#allocation3], %s266
        %p268 = pneg %p45
        %p269 = pneg %p42
        %p270 = pneg %p66
        %p271 = pneg %p63
        %p272 = pneg %p87
        %p273 = pneg %p84
        %p274 = pneg %p108
        %p275 = pneg %p105
        %p276 = pneg %p129
        %p277 = pneg %p126
        %p278 = pneg %p150
        %p279 = pneg %p147
        %p280 = pneg %p176
        %p281 = pneg %p173
        %s282 = sand.u32 %s163, 1
        %s283 = scalar_lea.sflag [#allocation5], %s282
        %s284 = sand.u32 %s163, 1
        %s285 = smul.addr %s284, 8
        %s286 = scalar_lea.vmem [#allocation8], %s285
        %v287 = vld [vmem:[%s252] sm:$0xff]
        %v288 = vld [vmem:[%s252 + $0x8] sm:$0xff]
        %289 = vrot.lane.b32.xlu0 %v287, 17
        %v290 = vpop.permute.xlu0 %289
        %291 = vrot.lane.b32.xlu0 %v288, 17
        %v292 = vpop.permute.xlu0 %291
        %v293 = vlaneseq
        %v294 = vand.u32 %v293, 127
        %vm295 = vcmp.lt.s32.totalorder %v294, 17
        %v296 = vsel %vm295, %v290, %v292
        %v297 = vsel %vm295, %v292, %v290
        %v298 = vld [vmem:[#allocation6] ss:$8 sm:$0x3]
        %v300 = vperm.slane %v298, 0
        %v301 = vperm.slane %v298, 1
        %v304 = vmul.f32 %v297, %v300
        %v305 = vmul.f32 %v296, %v301
        %306 = vst [vmem:[#allocation2] sm:$0xff] %v304
        %307 = vst [vmem:[#allocation2 + $0x8] sm:$0xff] %v305
        %308 = vrot.lane.b32.xlu0 %v287, 16
        %v309 = vpop.permute.xlu0 %308
        %310 = vrot.lane.b32.xlu0 %v288, 16
        %v311 = vpop.permute.xlu0 %310
        %vm312 = vcmp.lt.s32.totalorder %v294, 16
        %v313 = vsel %vm312, %v309, %v311
        %v314 = vsel %vm312, %v311, %v309
        %s315 = scalar_lea.vmem [#allocation6], 1
        %v316 = vld [vmem:[%s315] ss:$8 sm:$0x3]
        %v318 = vperm.slane %v316, 0
        %v319 = vperm.slane %v316, 1
        %v322 = vmul.f32 %v314, %v318
        %v323 = vmul.f32 %v313, %v319
        %324 = vst [vmem:[#allocation2 + $0x10] sm:$0xff] %v322
        %325 = vst [vmem:[#allocation2 + $0x18] sm:$0xff] %v323
        %326 = vrot.lane.b32.xlu0 %v287, 15
        %v327 = vpop.permute.xlu0 %326
        %328 = vrot.lane.b32.xlu0 %v288, 15
        %v329 = vpop.permute.xlu0 %328
        %vm330 = vcmp.lt.s32.totalorder %v294, 15
        %v331 = vsel %vm330, %v327, %v329
        %v332 = vsel %vm330, %v329, %v327
        %s333 = scalar_lea.vmem [#allocation6], 2
        %v334 = vld [vmem:[%s333] ss:$8 sm:$0x3]
        %v336 = vperm.slane %v334, 0
        %v337 = vperm.slane %v334, 1
        %v340 = vmul.f32 %v332, %v336
        %v341 = vmul.f32 %v331, %v337
        %342 = vst [vmem:[#allocation2 + $0x20] sm:$0xff] %v340
        %343 = vst [vmem:[#allocation2 + $0x28] sm:$0xff] %v341
        %344 = vrot.lane.b32.xlu0 %v287, 1
        %v345 = vpop.permute.xlu0 %344
        %346 = vrot.lane.b32.xlu0 %v288, 1
        %v347 = vpop.permute.xlu0 %346
        %vm348 = vcmp.lt.s32.totalorder %v294, 1
        %v349 = vsel %vm348, %v345, %v347
        %v350 = vsel %vm348, %v347, %v345
        %s351 = scalar_lea.vmem [#allocation6], 3
        %v352 = vld [vmem:[%s351] ss:$8 sm:$0x3]
        %v354 = vperm.slane %v352, 0
        %v355 = vperm.slane %v352, 1
        %v358 = vmul.f32 %v350, %v354
        %v359 = vmul.f32 %v349, %v355
        %360 = vst [vmem:[#allocation2 + $0x30] sm:$0xff] %v358
        %361 = vst [vmem:[#allocation2 + $0x38] sm:$0xff] %v359
        %362 = vst [vmem:[#allocation2 + $0x40] sm:$0xff] %v287
        %363 = vst [vmem:[#allocation2 + $0x48] sm:$0xff] %v288
        %364 = vrot.lane.b32.xlu0 %v287, 127
        %v365 = vpop.permute.xlu0 %364
        %366 = vrot.lane.b32.xlu0 %v288, 127
        %v367 = vpop.permute.xlu0 %366
        %vm368 = vcmp.lt.s32.totalorder %v294, 127
        %v369 = vsel %vm368, %v365, %v367
        %v370 = vsel %vm368, %v367, %v365
        %s371 = scalar_lea.vmem [#allocation6], 5
        %v372 = vld [vmem:[%s371] ss:$8 sm:$0x3]
        %v374 = vperm.slane %v372, 0
        %v375 = vperm.slane %v372, 1
        %v378 = vmul.f32 %v369, %v374
        %v379 = vmul.f32 %v370, %v375
        %380 = vst [vmem:[#allocation2 + $0x50] sm:$0xff] %v378
        %381 = vst [vmem:[#allocation2 + $0x58] sm:$0xff] %v379
        %382 = vrot.lane.b32.xlu0 %v287, 113
        %v383 = vpop.permute.xlu0 %382
        %384 = vrot.lane.b32.xlu0 %v288, 113
        %v385 = vpop.permute.xlu0 %384
        %vm386 = vcmp.lt.s32.totalorder %v294, 113
        %v387 = vsel %vm386, %v383, %v385
        %v388 = vsel %vm386, %v385, %v383
        %s389 = scalar_lea.vmem [#allocation6], 6
        %v390 = vld [vmem:[%s389] ss:$8 sm:$0x3]
        %v392 = vperm.slane %v390, 0
        %v393 = vperm.slane %v390, 1
        %v396 = vmul.f32 %v387, %v392
        %v397 = vmul.f32 %v388, %v393
        %398 = vst [vmem:[#allocation2 + $0x60] sm:$0xff] %v396
        %399 = vst [vmem:[#allocation2 + $0x68] sm:$0xff] %v397
        %400 = vrot.lane.b32.xlu0 %v287, 112
        %v401 = vpop.permute.xlu0 %400
        %402 = vrot.lane.b32.xlu0 %v288, 112
        %v403 = vpop.permute.xlu0 %402
        %vm404 = vcmp.lt.s32.totalorder %v294, 112
        %v405 = vsel %vm404, %v401, %v403
        %v406 = vsel %vm404, %v403, %v401
        %s407 = scalar_lea.vmem [#allocation6], 7
        %v408 = vld [vmem:[%s407] ss:$8 sm:$0x3]
        %v410 = vperm.slane %v408, 0
        %v411 = vperm.slane %v408, 1
        %v414 = vmul.f32 %v405, %v410
        %v415 = vmul.f32 %v406, %v411
        %416 = vst [vmem:[#allocation2 + $0x70] sm:$0xff] %v414
        %417 = vst [vmem:[#allocation2 + $0x78] sm:$0xff] %v415
        %418 = vrot.lane.b32.xlu0 %v287, 111
        %v419 = vpop.permute.xlu0 %418
        %420 = vrot.lane.b32.xlu0 %v288, 111
        %v421 = vpop.permute.xlu0 %420
        %vm422 = vcmp.lt.s32.totalorder %v294, 111
        %v423 = vsel %vm422, %v419, %v421
        %v424 = vsel %vm422, %v421, %v419
        %s425 = scalar_lea.vmem [#allocation6], 16
        %v426 = vld [vmem:[%s425] ss:$8 sm:$0x3]
        %v428 = vperm.slane %v426, 0
        %v429 = vperm.slane %v426, 1
        %v432 = vmul.f32 %v423, %v428
        %v433 = vmul.f32 %v424, %v429
        %434 = vst [vmem:[#allocation2 + $0x80] sm:$0xff] %v432
        %435 = vst [vmem:[#allocation2 + $0x88] sm:$0xff] %v433
        %v436 = vld [vmem:[%s2] sm:$0xff]
        %v437 = vld [vmem:[#allocation2] sm:$0xff]
        %v438 = vld [vmem:[#allocation2 + $0x8] sm:$0xff]
        %v439 = vld [vmem:[#allocation2 + $0x10] sm:$0xff]
        %v440 = vld [vmem:[#allocation2 + $0x18] sm:$0xff]
        %v441 = vld [vmem:[#allocation2 + $0x20] sm:$0xff]
        %v442 = vld [vmem:[#allocation2 + $0x28] sm:$0xff]
        %v443 = vld [vmem:[#allocation2 + $0x30] sm:$0xff]
        %v444 = vld [vmem:[#allocation2 + $0x38] sm:$0xff]
        %v445 = vld [vmem:[#allocation2 + $0x40] sm:$0xff]
        %v446 = vld [vmem:[#allocation2 + $0x48] sm:$0xff]
        %v447 = vld [vmem:[#allocation2 + $0x50] sm:$0xff]
        %v448 = vld [vmem:[#allocation2 + $0x58] sm:$0xff]
        %v449 = vld [vmem:[#allocation2 + $0x60] sm:$0xff]
        %v450 = vld [vmem:[#allocation2 + $0x68] sm:$0xff]
        %v451 = vld [vmem:[#allocation2 + $0x70] sm:$0xff]
        %v452 = vld [vmem:[#allocation2 + $0x78] sm:$0xff]
        %v453 = vld [vmem:[#allocation2 + $0x80] sm:$0xff]
        %v454 = vld [vmem:[#allocation2 + $0x88] sm:$0xff]
        %v455 = vld [vmem:[%s3] sm:$0xff]
        %457 = vset.pattern.permute.xlu0 0
        %458 = vperm.xlu0 %457, %v455
        %v459 = vpop.permute.xlu0 %458
        %vm461 = vcmask 588800
        %v463 = vsel %vm461, %v436, 0
        %465 = vmatpush.msra.mxu0 0.0
        %466 = vmatpush.msra.mxu0 0.0
        %467 = vmatpush.msra.mxu0 0.0
        %468 = vmatpush.msra.mxu0 0.0
        %469 = vmatpush.msra.mxu0 0.0
        %470 = vmatpush.msra.mxu0 0.0
        %471 = vmatpush.msra.mxu0 0.0
        %472 = vmatpush.msra.mxu0 %v453
        %473 = vmatpush.msra.mxu0 %v451
        %474 = vmatpush.msra.mxu0 %v449
        %475 = vmatpush.msra.mxu0 %v447
        %476 = vmatpush.msra.mxu0 %v445
        %477 = vmatpush.msra.mxu0 %v443
        %478 = vmatpush.msra.mxu0 %v441
        %479 = vmatpush.msra.mxu0 %v439
        %480 = vmatpush.msra.mxu0 %v437
        %481 = vmatmul.f32.gmra.mxu0 %v463
        %v482 = vpop.f32.mrf.mxu0
        %v483 = vadd.f32 %v459, %v482
        %484 = vdwg.mxu0
        %485 = vmatpush.msra.mxu0 0.0
        %486 = vmatpush.msra.mxu0 0.0
        %487 = vmatpush.msra.mxu0 0.0
        %488 = vmatpush.msra.mxu0 0.0
        %489 = vmatpush.msra.mxu0 0.0
        %490 = vmatpush.msra.mxu0 0.0
        %491 = vmatpush.msra.mxu0 0.0
        %492 = vmatpush.msra.mxu0 %v454
        %493 = vmatpush.msra.mxu0 %v452
        %494 = vmatpush.msra.mxu0 %v450
        %495 = vmatpush.msra.mxu0 %v448
        %496 = vmatpush.msra.mxu0 %v446
        %497 = vmatpush.msra.mxu0 %v444
        %498 = vmatpush.msra.mxu0 %v442
        %499 = vmatpush.msra.mxu0 %v440
        %500 = vmatpush.msra.mxu0 %v438
        %501 = vmatmul.f32.gmra.mxu0 %v463
        %v502 = vpop.f32.mrf.mxu0
        %v503 = vadd.f32 %v459, %v502
        %504 = vdwg.mxu0
        %v505 = vmax.f32 %v483, 0.0
        %v506 = vmax.f32 %v503, 0.0
        %507 = vrot.lane.b32.xlu0 %v505, 17
        %v508 = vpop.permute.xlu0 %507
        %509 = vrot.lane.b32.xlu0 %v506, 17
        %v510 = vpop.permute.xlu0 %509
        %v511 = vsel %vm295, %v508, %v510
        %v512 = vsel %vm295, %v510, %v508
        %v513 = vld [vmem:[#allocation6] ss:$8 sm:$0x3]
        %v515 = vperm.slane %v513, 0
        %v516 = vperm.slane %v513, 1
        %v519 = vmul.f32 %v512, %v515
        %v520 = vmul.f32 %v511, %v516
        %521 = vst [vmem:[#allocation2] sm:$0xff] %v519
        %522 = vst [vmem:[#allocation2 + $0x8] sm:$0xff] %v520
        %523 = vrot.lane.b32.xlu0 %v505, 16
        %v524 = vpop.permute.xlu0 %523
        %525 = vrot.lane.b32.xlu0 %v506, 16
        %v526 = vpop.permute.xlu0 %525
        %v527 = vsel %vm312, %v524, %v526
        %v528 = vsel %vm312, %v526, %v524
        %v529 = vld [vmem:[%s315] ss:$8 sm:$0x3]
        %v531 = vperm.slane %v529, 0
        %v532 = vperm.slane %v529, 1
        %v535 = vmul.f32 %v528, %v531
        %v536 = vmul.f32 %v527, %v532
        %537 = vst [vmem:[#allocation2 + $0x10] sm:$0xff] %v535
        %538 = vst [vmem:[#allocation2 + $0x18] sm:$0xff] %v536
        %539 = vrot.lane.b32.xlu0 %v505, 15
        %v540 = vpop.permute.xlu0 %539
        %541 = vrot.lane.b32.xlu0 %v506, 15
        %v542 = vpop.permute.xlu0 %541
        %v543 = vsel %vm330, %v540, %v542
        %v544 = vsel %vm330, %v542, %v540
        %v545 = vld [vmem:[%s333] ss:$8 sm:$0x3]
        %v547 = vperm.slane %v545, 0
        %v548 = vperm.slane %v545, 1
        %v551 = vmul.f32 %v544, %v547
        %v552 = vmul.f32 %v543, %v548
        %553 = vst [vmem:[#allocation2 + $0x20] sm:$0xff] %v551
        %554 = vst [vmem:[#allocation2 + $0x28] sm:$0xff] %v552
        %555 = vrot.lane.b32.xlu0 %v505, 1
        %v556 = vpop.permute.xlu0 %555
        %557 = vrot.lane.b32.xlu0 %v506, 1
        %v558 = vpop.permute.xlu0 %557
        %v559 = vsel %vm348, %v556, %v558
        %v560 = vsel %vm348, %v558, %v556
        %v561 = vld [vmem:[%s351] ss:$8 sm:$0x3]
        %v563 = vperm.slane %v561, 0
        %v564 = vperm.slane %v561, 1
        %v567 = vmul.f32 %v560, %v563
        %v568 = vmul.f32 %v559, %v564
        %569 = vst [vmem:[#allocation2 + $0x30] sm:$0xff] %v567
        %570 = vst [vmem:[#allocation2 + $0x38] sm:$0xff] %v568
        %571 = vst [vmem:[#allocation2 + $0x40] sm:$0xff] %v505
        %572 = vst [vmem:[#allocation2 + $0x48] sm:$0xff] %v506
        %573 = vrot.lane.b32.xlu0 %v505, 127
        %v574 = vpop.permute.xlu0 %573
        %575 = vrot.lane.b32.xlu0 %v506, 127
        %v576 = vpop.permute.xlu0 %575
        %v577 = vsel %vm368, %v574, %v576
        %v578 = vsel %vm368, %v576, %v574
        %v579 = vld [vmem:[%s371] ss:$8 sm:$0x3]
        %v581 = vperm.slane %v579, 0
        %v582 = vperm.slane %v579, 1
        %v585 = vmul.f32 %v577, %v581
        %v586 = vmul.f32 %v578, %v582
        %587 = vst [vmem:[#allocation2 + $0x50] sm:$0xff] %v585
        %588 = vst [vmem:[#allocation2 + $0x58] sm:$0xff] %v586
        %589 = vrot.lane.b32.xlu0 %v505, 113
        %v590 = vpop.permute.xlu0 %589
        %591 = vrot.lane.b32.xlu0 %v506, 113
        %v592 = vpop.permute.xlu0 %591
        %v593 = vsel %vm386, %v590, %v592
        %v594 = vsel %vm386, %v592, %v590
        %v595 = vld [vmem:[%s389] ss:$8 sm:$0x3]
        %v597 = vperm.slane %v595, 0
        %v598 = vperm.slane %v595, 1
        %v601 = vmul.f32 %v593, %v597
        %v602 = vmul.f32 %v594, %v598
        %603 = vst [vmem:[#allocation2 + $0x60] sm:$0xff] %v601
        %604 = vst [vmem:[#allocation2 + $0x68] sm:$0xff] %v602
        %605 = vrot.lane.b32.xlu0 %v505, 112
        %v606 = vpop.permute.xlu0 %605
        %607 = vrot.lane.b32.xlu0 %v506, 112
        %v608 = vpop.permute.xlu0 %607
        %v609 = vsel %vm404, %v606, %v608
        %v610 = vsel %vm404, %v608, %v606
        %v611 = vld [vmem:[%s407] ss:$8 sm:$0x3]
        %v613 = vperm.slane %v611, 0
        %v614 = vperm.slane %v611, 1
        %v617 = vmul.f32 %v609, %v613
        %v618 = vmul.f32 %v610, %v614
        %619 = vst [vmem:[#allocation2 + $0x70] sm:$0xff] %v617
        %620 = vst [vmem:[#allocation2 + $0x78] sm:$0xff] %v618
        %621 = vrot.lane.b32.xlu0 %v505, 111
        %v622 = vpop.permute.xlu0 %621
        %623 = vrot.lane.b32.xlu0 %v506, 111
        %v624 = vpop.permute.xlu0 %623
        %v625 = vsel %vm422, %v622, %v624
        %v626 = vsel %vm422, %v624, %v622
        %v627 = vld [vmem:[%s425] ss:$8 sm:$0x3]
        %v629 = vperm.slane %v627, 0
        %v630 = vperm.slane %v627, 1
        %v633 = vmul.f32 %v625, %v629
        %v634 = vmul.f32 %v626, %v630
        %635 = vst [vmem:[#allocation2 + $0x80] sm:$0xff] %v633
        %636 = vst [vmem:[#allocation2 + $0x88] sm:$0xff] %v634
        %v637 = vld [vmem:[%s4] sm:$0xf]
        %v638 = vld [vmem:[#allocation2] sm:$0xff]
        %v639 = vld [vmem:[#allocation2 + $0x8] sm:$0xff]
        %v640 = vld [vmem:[#allocation2 + $0x10] sm:$0xff]
        %v641 = vld [vmem:[#allocation2 + $0x18] sm:$0xff]
        %v642 = vld [vmem:[#allocation2 + $0x20] sm:$0xff]
        %v643 = vld [vmem:[#allocation2 + $0x28] sm:$0xff]
        %v644 = vld [vmem:[#allocation2 + $0x30] sm:$0xff]
        %v645 = vld [vmem:[#allocation2 + $0x38] sm:$0xff]
        %v646 = vld [vmem:[#allocation2 + $0x40] sm:$0xff]
        %v647 = vld [vmem:[#allocation2 + $0x48] sm:$0xff]
        %v648 = vld [vmem:[#allocation2 + $0x50] sm:$0xff]
        %v649 = vld [vmem:[#allocation2 + $0x58] sm:$0xff]
        %v650 = vld [vmem:[#allocation2 + $0x60] sm:$0xff]
        %v651 = vld [vmem:[#allocation2 + $0x68] sm:$0xff]
        %v652 = vld [vmem:[#allocation2 + $0x70] sm:$0xff]
        %v653 = vld [vmem:[#allocation2 + $0x78] sm:$0xff]
        %v654 = vld [vmem:[#allocation2 + $0x80] sm:$0xff]
        %v655 = vld [vmem:[#allocation2 + $0x88] sm:$0xff]
        %v656 = vld [vmem:[%s5] sm:$0xf]
        %658 = vset.pattern.permute.xlu0 0
        %659 = vperm.xlu0 %658, %v656
        %v660 = vpop.permute.xlu0 %659
        %v663 = vsel %vm461, %v637, 0
        %665 = vmatpush.msra.mxu0 0.0
        %666 = vmatpush.msra.mxu0 0.0
        %667 = vmatpush.msra.mxu0 0.0
        %668 = vmatpush.msra.mxu0 0.0
        %669 = vmatpush.msra.mxu0 0.0
        %670 = vmatpush.msra.mxu0 0.0
        %671 = vmatpush.msra.mxu0 0.0
        %672 = vmatpush.msra.mxu0 %v654
        %673 = vmatpush.msra.mxu0 %v652
        %674 = vmatpush.msra.mxu0 %v650
        %675 = vmatpush.msra.mxu0 %v648
        %676 = vmatpush.msra.mxu0 %v646
        %677 = vmatpush.msra.mxu0 %v644
        %678 = vmatpush.msra.mxu0 %v642
        %679 = vmatpush.msra.mxu0 %v640
        %680 = vmatpush.msra.mxu0 %v638
        %681 = vmatmul.f32.gmra.mxu0 %v663
        %v682 = vpop.f32.mrf.mxu0
        %v683 = vadd.f32 %v660, %v682
        %684 = vdwg.mxu0
        %685 = vmatpush.msra.mxu0 0.0
        %686 = vmatpush.msra.mxu0 0.0
        %687 = vmatpush.msra.mxu0 0.0
        %688 = vmatpush.msra.mxu0 0.0
        %689 = vmatpush.msra.mxu0 0.0
        %690 = vmatpush.msra.mxu0 0.0
        %691 = vmatpush.msra.mxu0 0.0
        %692 = vmatpush.msra.mxu0 %v655
        %693 = vmatpush.msra.mxu0 %v653
        %694 = vmatpush.msra.mxu0 %v651
        %695 = vmatpush.msra.mxu0 %v649
        %696 = vmatpush.msra.mxu0 %v647
        %697 = vmatpush.msra.mxu0 %v645
        %698 = vmatpush.msra.mxu0 %v643
        %699 = vmatpush.msra.mxu0 %v641
        %700 = vmatpush.msra.mxu0 %v639
        %701 = vmatmul.f32.gmra.mxu0 %v663
        %v702 = vpop.f32.mrf.mxu0
        %v703 = vadd.f32 %v660, %v702
        %704 = vdwg.mxu0
        %v705 = vadd.f32 %v683, %v287
        %v706 = vadd.f32 %v703, %v288
        %v709 = vrot.slane %v706, 4
        %vm710 = vcmask 1043456
        %v711 = vsel %vm710, %v705, %v709
        %713 = vst [vmem:[%s286] sm:$0xff] %v711
        %s714 = sand.u32 %s163, 1
        %s715 = scalar_lea.sflag [#allocation5], %s714
        %s716 = sand.u32 %s163, 1
        %s717 = smul.addr %s716, 8
        %s718 = scalar_lea.vmem [#allocation8], %s717
        // Predicated region
        $region53: #{tpu_custom_call.1} parent=43 // pred_check
          %p719 = pneg %p173
        $region54: #{tpu_custom_call.1} parent=43 // pred_check_branch
          %721 = sbr.rel (%p719) target = $region56
        $region55: #{tpu_custom_call.1} parent=43 // pred_region
          %723 = vsyncadd %s715, 0
          %s724 = smul.addr %s24, 2
          %s725 = smul.addr %s724, 4
          %s726 = scalar_lea.hbm %s6, %s725
          %s728 = sshll.u32 %s718, 4
          %s729 = int_to_ptr.vmem [resolvable:$true] %s728
          %s730 = sshll.u32 %s726, 4
          %s731 = int_to_ptr.hbm [resolvable:$true] %s730
          %733 = dma.vmem_to_hbm [thread:$0]  %s729, 128, %s731, %s715
        $region56: #{tpu_custom_call.1} parent=43 // pred_fallthru
          _
      $region44: #{tpu_custom_call.1} parent=5 // pred_fallthru
        _
      %p734 = scmp.le.s32.totalorder 2, %s19
      // Predicated region
      $region57: #{tpu_custom_call.1} parent=5 // pred_check
        %p735 = pneg %p734
      $region58: #{tpu_custom_call.1} parent=5 // pred_check_branch
        %737 = sbr.rel (%p735) target = $region60
      $region59: #{tpu_custom_call.1} parent=5 // pred_region
        %s738 = ssub.s32 %s19, 2
        // Predicated region
        $region61: #{tpu_custom_call.1} parent=59 // pred_check
          %p739 = pneg %p179
        $region62: #{tpu_custom_call.1} parent=59 // pred_check_branch
          %741 = sbr.rel (%p739) target = $region64
        $region63: #{tpu_custom_call.1} parent=59 // pred_region
          %s742 = sand.u32 %s164, 1
          %s743 = scalar_lea.sflag [#allocation5], %s742
          %s744 = sand.u32 %s164, 1
          %s745 = smul.addr %s744, 8
          %s746 = scalar_lea.vmem [#allocation8], %s745
          %748 = dma.done %s743, 128
        $region64: #{tpu_custom_call.1} parent=59 // pred_fallthru
          _
      $region60: #{tpu_custom_call.1} parent=5 // pred_fallthru
        _
    $region6: #{tpu_custom_call.1} parent=1 // loop_footer
      %s23 = sadd.s32 1, %s19
    $region7: #{tpu_custom_call.1} parent=1 // loop_footer_branch
      %18 = sbr.rel target = $region3
    $region8: #{tpu_custom_call.1} parent=1 // loop_exit
      _
    %749 = vsyncpa [#allocation4], 1
    %s750 = scalar_lea.sflag [#allocation4], 1
    %751 = vsyncpa %s750, 1
    %752 = vsyncpa [#allocation7], 1
    %753 = vsyncpa [#allocation5], 1
    %s754 = scalar_lea.sflag [#allocation5], 1
    %755 = vsyncpa %s754, 1

</llo_original>
